<compile_context>
chip_gen: v6e
topology: v6e:2x2x1
jax: 0.10.0
libtpu: 0.0.40
codegen_flags: <defaults>
</compile_context>

<pallas_src>
import functools

import numpy as np
import jax
import jax.numpy as jnp
from jax.experimental import pallas as pl
from jax.experimental.pallas import tpu as pltpu


def _round_up(v: int, m: int) -> int:
    return ((v + m - 1) // m) * m


def _freq_bands(multires: int, log_sampling: bool = True):
    """Matches torch.linspace-based freq band construction (host side)."""
    max_freq = float(multires - 1)
    if log_sampling:
        bands = 2.0 ** np.linspace(0.0, max_freq, num=multires)
    else:
        bands = np.linspace(2.0 ** 0.0, 2.0 ** max_freq, num=multires)
    return [float(f) for f in bands]


def _pe_kernel(x_ref, scale_ref, kind_ref, o_ref, *, n_slabs):
    """One row tile: lane-dense positional embedding.

    x_ref:     (tn, D)        f32
    scale_ref: (1, out_d)     f32   per-column frequency (1.0 for input slab)
    kind_ref:  (1, out_d)     int32 0 = include-input, 1 = sin, 2 = cos
    o_ref:     (tn, out_d)
    """
    x = x_ref[...]                                        # (tn, D)
    # Replicate x across the output lane layout: [x | x | ... | x].
    xt = jnp.concatenate([x] * n_slabs, axis=1)           # (tn, out_d)
    xf = xt * scale_ref[...]                              # per-column freq scale

    kind = kind_ref[...]                                  # (1, out_d)
    is_inp = kind == 0
    is_sin = kind == 1

    trig = jnp.where(is_sin, jnp.sin(xf), jnp.cos(xf))    # dense sin/cos
    o_ref[...] = jnp.where(is_inp, xf, trig).astype(o_ref.dtype)


def nerf_positional_embedding(x, multires: int, log_sampling: bool = True,
                              tile_rows: int = 1024, out_dtype=None):
    """x: (1, N, D) or (N, D) -> (N, D * (1 + 2*multires))."""
    if x.ndim == 3:
        assert x.shape[0] == 1, "leading dim must be 1 (squeeze(0) semantics)"
        x = x[0]
    assert x.ndim == 2, f"Expected 2D input (got {x.ndim}D input)"
    x = x.astype(jnp.float32)                      # keep all math in f32
    n, d = x.shape

    freqs = _freq_bands(multires, log_sampling)
    n_slabs = 1 + 2 * len(freqs)
    out_d = d * n_slabs
    out_dtype = jnp.float32 if out_dtype is None else out_dtype

    # Static per-output-column metadata. Column j belongs to slab s = j // d:
    #   s == 0      -> include-input slab (kind 0, scale 1)
    #   s == 2k + 1 -> sin(x * freqs[k])  (kind 1)
    #   s == 2k + 2 -> cos(x * freqs[k])  (kind 2)
    scale_np = np.ones((1, out_d), np.float32)
    kind_np = np.zeros((1, out_d), np.int32)
    for s in range(1, n_slabs):
        k = (s - 1) // 2
        scale_np[0, s * d:(s + 1) * d] = freqs[k]
        kind_np[0, s * d:(s + 1) * d] = 1 if (s % 2 == 1) else 2
    scale = jnp.asarray(scale_np)
    kind = jnp.asarray(kind_np)

    # Row tiling: big tiles to amortize per-step pipeline overhead; pad N to a
    # multiple of the tile so the grid always divides evenly.
    tn = int(min(max(8, _round_up(tile_rows, 8)), _round_up(n, 8)))
    n_pad = _round_up(n, tn)
    if n_pad != n:
        x = jnp.pad(x, ((0, n_pad - n), (0, 0)))
    grid = (n_pad // tn,)

    kernel = functools.partial(_pe_kernel, n_slabs=n_slabs)
    out = pl.pallas_call(
        kernel,
        out_shape=jax.ShapeDtypeStruct((n_pad, out_d), out_dtype),
        grid_spec=pltpu.PrefetchScalarGridSpec(
            num_scalar_prefetch=0,
            grid=grid,
            in_specs=[
                pl.BlockSpec((tn, d), lambda i: (i, 0)),        # x rows
                pl.BlockSpec((1, out_d), lambda i: (0, 0)),     # freq scale row
                pl.BlockSpec((1, out_d), lambda i: (0, 0)),     # slab kind row
            ],
            out_specs=pl.BlockSpec((tn, out_d), lambda i: (i, 0)),
        ),
        compiler_params=pltpu.CompilerParams(
            dimension_semantics=("parallel",)),   # megacore shard on v7x
    )(x, scale, kind)

    if n_pad != n:
        out = out[:n]
    return out


def _reference(x, multires, log_sampling=True):
    """Pure-JAX reference mirroring the PyTorch forward."""
    x = x[0] if x.ndim == 3 else x
    x = x.astype(jnp.float32)
    freqs = _freq_bands(multires, log_sampling)
    outs = [x]
    for f in freqs:
        outs.append(jnp.sin(x * f))
        outs.append(jnp.cos(x * f))
    return jnp.concatenate(outs, axis=1)


if __name__ == "__main__":
    key = jax.random.PRNGKey(0)

    # Case 1: small, non-multiple-of-8 row count (exercises pad + slice path),
    # 3D input like the module (squeeze(0) semantics).
    multires = 5
    N, D = 20, 3
    x = jax.random.normal(key, (1, N, D), dtype=jnp.float32)
    out = jax.block_until_ready(
        nerf_positional_embedding(x, multires=multires, log_sampling=True))
    ref = _reference(x, multires=multires, log_sampling=True)
    assert out.shape == (N, D * (1 + 2 * multires)), out.shape
    assert jnp.allclose(out, ref, atol=1e-5, rtol=1e-5), "case1 mismatch"

    # Case 2: multi-step grid with small tiles + non-log sampling.
    multires2 = 10
    N2, D2 = 300, 3
    x2 = jax.random.normal(jax.random.PRNGKey(1), (N2, D2), dtype=jnp.float32)
    out2 = jax.block_until_ready(
        nerf_positional_embedding(x2, multires=multires2, log_sampling=False,
                                  tile_rows=128))
    ref2 = _reference(x2, multires=multires2, log_sampling=False)
    assert out2.shape == (N2, D2 * (1 + 2 * multires2)), out2.shape
    assert jnp.allclose(out2, ref2, atol=1e-5, rtol=1e-5), "case2 mismatch"

    print("KERNEL_OK")
</pallas_src>

<mosaic_0001>
module attributes {stable_mosaic.version = 11 : i64} {
  func.func @_pe_kernel(%arg0: i32, %arg1: memref<24x3xf32, #tpu.memory_space<vmem>>, %arg2: memref<1x33xf32, #tpu.memory_space<vmem>>, %arg3: memref<1x33xi32, #tpu.memory_space<vmem>>, %arg4: memref<24x33xf32, #tpu.memory_space<vmem>>) attributes {dimension_semantics = [#tpu.dimension_semantics<parallel>], iteration_bounds = array<i64: 1>, scalar_prefetch = 0 : i64, scratch_operands = 0 : i64, tpu.core_type = #tpu.core_type<tc>, window_params = [{transform_indices = @transform_0, window_bounds = array<i64: 24, 3>}, {pipeline_mode = #tpu.pipeline_mode<synchronous>, transform_indices = @transform_1, window_bounds = array<i64: 1, 33>}, {pipeline_mode = #tpu.pipeline_mode<synchronous>, transform_indices = @transform_2, window_bounds = array<i64: 1, 33>}, {transform_indices = @transform_3, window_bounds = array<i64: 24, 33>}]} {
    %c0 = arith.constant 0 : index
    %c0_0 = arith.constant 0 : index
    %0 = vector.load %arg1[%c0, %c0_0] : memref<24x3xf32, #tpu.memory_space<vmem>>, vector<24x3xf32>
    %1 = tpu.concatenate %0, %0, %0, %0, %0, %0, %0, %0, %0, %0, %0 in 1 : vector<24x3xf32>, vector<24x3xf32>, vector<24x3xf32>, vector<24x3xf32>, vector<24x3xf32>, vector<24x3xf32>, vector<24x3xf32>, vector<24x3xf32>, vector<24x3xf32>, vector<24x3xf32>, vector<24x3xf32> -> vector<24x33xf32>
    %c0_1 = arith.constant 0 : index
    %c0_2 = arith.constant 0 : index
    %2 = vector.load %arg2[%c0_1, %c0_2] : memref<1x33xf32, #tpu.memory_space<vmem>>, vector<1x33xf32>
    %3 = vector.broadcast %2 : vector<1x33xf32> to vector<24x33xf32>
    %4 = arith.mulf %1, %3 : vector<24x33xf32>
    %c0_3 = arith.constant 0 : index
    %c0_4 = arith.constant 0 : index
    %5 = vector.load %arg3[%c0_3, %c0_4] : memref<1x33xi32, #tpu.memory_space<vmem>>, vector<1x33xi32>
    %c0_i32 = arith.constant 0 : i32
    %6 = vector.broadcast %c0_i32 : i32 to vector<1x33xi32>
    %7 = arith.cmpi eq, %5, %6 : vector<1x33xi32>
    %c1_i32 = arith.constant 1 : i32
    %8 = vector.broadcast %c1_i32 : i32 to vector<1x33xi32>
    %9 = arith.cmpi eq, %5, %8 : vector<1x33xi32>
    %10 = math.sin %4 : vector<24x33xf32>
    %11 = math.cos %4 : vector<24x33xf32>
    %12 = vector.shape_cast %9 : vector<1x33xi1> to vector<1x33xi1>
    %13 = vector.broadcast %12 : vector<1x33xi1> to vector<24x33xi1>
    %14 = arith.select %13, %10, %11 : vector<24x33xi1>, vector<24x33xf32>
    %15 = vector.shape_cast %7 : vector<1x33xi1> to vector<1x33xi1>
    %16 = vector.broadcast %15 : vector<1x33xi1> to vector<24x33xi1>
    %17 = arith.select %16, %4, %14 : vector<24x33xi1>, vector<24x33xf32>
    %c0_5 = arith.constant 0 : index
    %c0_6 = arith.constant 0 : index
    %18 = vector.load %arg4[%c0_5, %c0_6] : memref<24x33xf32, #tpu.memory_space<vmem>>, vector<24x33xf32>
    tpu.vector_store %arg4[%c0_5, %c0_6], %17 {strides = array<i32>} : memref<24x33xf32, #tpu.memory_space<vmem>>, vector<24x33xf32>,
    return
  }
  func.func @transform_0(%arg0: i32) -> (i32, i32) {
    %c0_i32 = arith.constant 0 : i32
    %c0_i32_0 = arith.constant 0 : i32
    return %arg0, %c0_i32 : i32, i32
  }
  func.func @transform_1(%arg0: i32) -> (i32, i32) {
    %c0_i32 = arith.constant 0 : i32
    %c0_i32_0 = arith.constant 0 : i32
    %c0_i32_1 = arith.constant 0 : i32
    return %c0_i32, %c0_i32_0 : i32, i32
  }
  func.func @transform_2(%arg0: i32) -> (i32, i32) {
    %c0_i32 = arith.constant 0 : i32
    %c0_i32_0 = arith.constant 0 : i32
    %c0_i32_1 = arith.constant 0 : i32
    return %c0_i32, %c0_i32_0 : i32, i32
  }
  func.func @transform_3(%arg0: i32) -> (i32, i32) {
    %c0_i32 = arith.constant 0 : i32
    %c0_i32_0 = arith.constant 0 : i32
    return %arg0, %c0_i32 : i32, i32
  }
}

</mosaic_0001>

<llo_original>
// kernel: tpu_custom_call.1
$region0: #{tpu_custom_call.1}
  #allocation0 [shape = 'u32[]', space=smem, size = 0x4, offset = 0x4, fixed_abs, tag = 'smem constant byte address 0x4 - core index']
  #allocation1 [shape = 'u32[144,128]{1,0:T(1,128)}', space=vmem, size = 0x12000, scoped, tag = 'internal scratch']
  %s0 = inlined_call_operand.vmem [shape: f32[24,3], index: 0, kind: input, shape index: {}]
  %s1 = inlined_call_operand.vmem [shape: f32[1,33], index: 1, kind: input, shape index: {}]
  %s2 = inlined_call_operand.vmem [shape: s32[1,33], index: 2, kind: input, shape index: {}]
  %s3 = inlined_call_operand.hbm [shape: f32[24,33], index: 3, kind: output, shape index: {}]
  %s4 = sld [smem:[#allocation0]]
  $region22: #{tpu_custom_call.1} parent=0
    _
  %s6 = ssub.s32 1, %s4
  %s7 = scalar_select 0, %s6, %s4
  $region1: #{tpu_custom_call.1} parent=0
    #allocation2 [shape = 'u8[12288]{0}', space=vmem, size = 0x3000, scoped, tag = 'output window, operand 0, single buffered']
    #allocation3 [shape = 's32[1]{0}', space=sflag, size = 0x4, scoped, tag = 'scoped memory for tpu_custom_call.1']
    %8 = vsyncpa [#allocation3], 0
    // Predicated region
    $region2: #{tpu_custom_call.1} parent=1 // pred_check
      _
    $region3: #{tpu_custom_call.1} parent=1 // pred_check_branch
      %10 = sbr.rel (0) target = $region5
    $region4: #{tpu_custom_call.1} parent=1 // pred_region
      _
    $region5: #{tpu_custom_call.1} parent=1 // pred_fallthru
      _
    // Predicated region
    $region6: #{tpu_custom_call.1} parent=1 // pred_check
      _
    $region7: #{tpu_custom_call.1} parent=1 // pred_check_branch
      %12 = sbr.rel (0) target = $region9
    $region8: #{tpu_custom_call.1} parent=1 // pred_region
      _
    $region9: #{tpu_custom_call.1} parent=1 // pred_fallthru
      _
    // Predicated region
    $region10: #{tpu_custom_call.1} parent=1 // pred_check
      _
    $region11: #{tpu_custom_call.1} parent=1 // pred_check_branch
      %14 = sbr.rel (0) target = $region13
    $region12: #{tpu_custom_call.1} parent=1 // pred_region
      _
    $region13: #{tpu_custom_call.1} parent=1 // pred_fallthru
      _
    %v15 = vld [vmem:[%s0] sm:$0xff]
    %v16 = vld [vmem:[%s0 + $0x8] sm:$0xff]
    %v17 = vld [vmem:[%s0 + $0x10] sm:$0xff]
    %21 = vrot.lane.b32.xlu0 %v15, 3
    %v22 = vpop.permute.xlu0 %21
    %23 = vrot.lane.b32.xlu0 %v16, 3
    %v24 = vpop.permute.xlu0 %23
    %25 = vrot.lane.b32.xlu0 %v17, 3
    %v26 = vpop.permute.xlu0 %25
    %30 = vrot.lane.b32.xlu0 %v15, 6
    %v31 = vpop.permute.xlu0 %30
    %32 = vrot.lane.b32.xlu0 %v16, 6
    %v33 = vpop.permute.xlu0 %32
    %34 = vrot.lane.b32.xlu0 %v17, 6
    %v35 = vpop.permute.xlu0 %34
    %39 = vrot.lane.b32.xlu0 %v15, 9
    %v40 = vpop.permute.xlu0 %39
    %41 = vrot.lane.b32.xlu0 %v16, 9
    %v42 = vpop.permute.xlu0 %41
    %43 = vrot.lane.b32.xlu0 %v17, 9
    %v44 = vpop.permute.xlu0 %43
    %48 = vrot.lane.b32.xlu0 %v15, 12
    %v49 = vpop.permute.xlu0 %48
    %50 = vrot.lane.b32.xlu0 %v16, 12
    %v51 = vpop.permute.xlu0 %50
    %52 = vrot.lane.b32.xlu0 %v17, 12
    %v53 = vpop.permute.xlu0 %52
    %57 = vrot.lane.b32.xlu0 %v15, 15
    %v58 = vpop.permute.xlu0 %57
    %59 = vrot.lane.b32.xlu0 %v16, 15
    %v60 = vpop.permute.xlu0 %59
    %61 = vrot.lane.b32.xlu0 %v17, 15
    %v62 = vpop.permute.xlu0 %61
    %66 = vrot.lane.b32.xlu0 %v15, 18
    %v67 = vpop.permute.xlu0 %66
    %68 = vrot.lane.b32.xlu0 %v16, 18
    %v69 = vpop.permute.xlu0 %68
    %70 = vrot.lane.b32.xlu0 %v17, 18
    %v71 = vpop.permute.xlu0 %70
    %75 = vrot.lane.b32.xlu0 %v15, 21
    %v76 = vpop.permute.xlu0 %75
    %77 = vrot.lane.b32.xlu0 %v16, 21
    %v78 = vpop.permute.xlu0 %77
    %79 = vrot.lane.b32.xlu0 %v17, 21
    %v80 = vpop.permute.xlu0 %79
    %84 = vrot.lane.b32.xlu0 %v15, 24
    %v85 = vpop.permute.xlu0 %84
    %86 = vrot.lane.b32.xlu0 %v16, 24
    %v87 = vpop.permute.xlu0 %86
    %88 = vrot.lane.b32.xlu0 %v17, 24
    %v89 = vpop.permute.xlu0 %88
    %93 = vrot.lane.b32.xlu0 %v15, 27
    %v94 = vpop.permute.xlu0 %93
    %95 = vrot.lane.b32.xlu0 %v16, 27
    %v96 = vpop.permute.xlu0 %95
    %97 = vrot.lane.b32.xlu0 %v17, 27
    %v98 = vpop.permute.xlu0 %97
    %102 = vrot.lane.b32.xlu0 %v15, 30
    %v103 = vpop.permute.xlu0 %102
    %104 = vrot.lane.b32.xlu0 %v16, 30
    %v105 = vpop.permute.xlu0 %104
    %106 = vrot.lane.b32.xlu0 %v17, 30
    %v107 = vpop.permute.xlu0 %106
    %vm111 = vcmask 23552
    %v112 = vsel %vm111, %v15, %v22
    %v113 = vsel %vm111, %v16, %v24
    %v114 = vsel %vm111, %v17, %v26
    %vm115 = vcmask 48128
    %v116 = vsel %vm115, %v112, %v31
    %v117 = vsel %vm115, %v113, %v33
    %v118 = vsel %vm115, %v114, %v35
    %vm119 = vcmask 72704
    %v120 = vsel %vm119, %v116, %v40
    %v121 = vsel %vm119, %v117, %v42
    %v122 = vsel %vm119, %v118, %v44
    %vm123 = vcmask 97280
    %v124 = vsel %vm123, %v120, %v49
    %v125 = vsel %vm123, %v121, %v51
    %v126 = vsel %vm123, %v122, %v53
    %vm127 = vcmask 121856
    %v128 = vsel %vm127, %v124, %v58
    %v129 = vsel %vm127, %v125, %v60
    %v130 = vsel %vm127, %v126, %v62
    %vm131 = vcmask 146432
    %v132 = vsel %vm131, %v128, %v67
    %v133 = vsel %vm131, %v129, %v69
    %v134 = vsel %vm131, %v130, %v71
    %vm135 = vcmask 171008
    %v136 = vsel %vm135, %v132, %v76
    %v137 = vsel %vm135, %v133, %v78
    %v138 = vsel %vm135, %v134, %v80
    %vm139 = vcmask 195584
    %v140 = vsel %vm139, %v136, %v85
    %v141 = vsel %vm139, %v137, %v87
    %v142 = vsel %vm139, %v138, %v89
    %vm143 = vcmask 220160
    %v144 = vsel %vm143, %v140, %v94
    %v145 = vsel %vm143, %v141, %v96
    %v146 = vsel %vm143, %v142, %v98
    %vm147 = vcmask 244736
    %v148 = vsel %vm147, %v144, %v103
    %v149 = vsel %vm147, %v145, %v105
    %v150 = vsel %vm147, %v146, %v107
    %v151 = vld [vmem:[%s1] sm:$0x1]
    %v153 = vlaneseq
    %v154 = vshrl.u32 %v153, 7
    %v155 = vsub.s32 0, %v154
    %v156 = vrot.slane %v151, %v155
    %v158 = vmul.f32 %v148, %v156
    %v159 = vmul.f32 %v149, %v156
    %v160 = vmul.f32 %v150, %v156
    %v161 = vld [vmem:[%s2] sm:$0x1]
    %vm162 = vcmp.eq.s32.totalorder %v161, 0
    %vm163 = vcmp.eq.s32.totalorder %v161, 1
    %v164 = vand.u32 2147483647, %v158
    %vm165 = vcmp.le.f32.partialorder %v164, 0.7853982
    %vm166 = vcmp.lt.s32.totalorder %v158, 0
    %v167 = vand.u32 %v158, 2139095040
    %v168 = vshrl.u32 %v167, 23
    %v169 = vsub.s32 %v168, 127
    %v170 = vand.u32 2147483647, %v158
    %v171 = vand.u32 %v170, 8388607
    %v172 = vor.u32 %v171, 8388608
    %v173 = vsub.s32 0, %v172
    %v174 = vadd.s32 %v169, 1
    %vm175 = vcmp.gt.s32.totalorder %v174, 0
    %v176 = vsel %vm175, %v174, 0
    %v177 = vshrl.u32 %v176, 5
    %v178 = vand.u32 %v176, 31
    %v179 = vsub.s32 32, %v178
    %v180 = vshrl.u32 683565275, %v179
    %v181 = vshll.u32 683565275, %v178
    %v182 = vshrl.u32 2475754826, %v179
    %v183 = vor.u32 %v181, %v182
    %v184 = vshll.u32 2475754826, %v178
    %v185 = vshrl.u32 2131351028, %v179
    %v186 = vor.u32 %v184, %v185
    %v187 = vshll.u32 2131351028, %v178
    %v188 = vshrl.u32 2102212464, %v179
    %v189 = vor.u32 %v187, %v188
    %v190 = vshll.u32 2102212464, %v178
    %v191 = vshrl.u32 920167782, %v179
    %v192 = vor.u32 %v190, %v191
    %v193 = vshll.u32 920167782, %v178
    %v194 = vshrl.u32 1326507024, %v179
    %v195 = vor.u32 %v193, %v194
    %vm196 = vcmp.lt.s32.totalorder %v177, 1
    %vm197 = vcmp.lt.s32.totalorder %v177, 2
    %vm198 = vcmp.lt.s32.totalorder %v177, 3
    %vm199 = vcmp.lt.s32.totalorder %v177, 4
    %v200 = vsel %vm196, %v180, %v183
    %v201 = vsel %vm199, %v189, 2102212464
    %v202 = vsel %vm198, %v186, %v201
    %v203 = vsel %vm197, %v200, %v202
    %v204 = vsel %vm196, %v183, %v186
    %v205 = vsel %vm199, %v192, 920167782
    %v206 = vsel %vm198, %v189, %v205
    %v207 = vsel %vm197, %v204, %v206
    %v208 = vsel %vm196, %v186, %v189
    %v209 = vsel %vm199, %v195, 1326507024
    %v210 = vsel %vm198, %v192, %v209
    %v211 = vsel %vm197, %v208, %v210
    %v212 = vshll.u32 %v172, 8
    %v213 = vmul.u32.u64.compose %v212, %v211
    %v214 = vextract.low.u32 %v213
    %v215 = vextract.high.u32 %v213
    %v216 = vmul.u32.u64.compose %v212, %v207
    %v217 = vextract.low.u32 %v216
    %v218 = vextract.high.u32 %v216
    %v219 = vmul.u32 %v212, %v203
    %v220 = vadd.s32 %v215, %v217
    %vm221 = vc.u32 %v215, %v217
    %v222 = vadd.s32 %v218, 1
    %v223 = vsel %vm221, %v222, %v218
    %v224 = vadd.s32 %v219, %v223
    %v225 = vadd.s32 %v224, 536870912
    %v226 = vshrl.u32 %v225, 30
    %v227 = vshll.u32 %v226, 30
    %v228 = vsub.s32 %v224, %v227
    %vm229 = vcmp.lt.s32.totalorder %v228, 0
    %v230 = vsub.s32 0, %v228
    %v231 = vsel %vm229, %v230, %v228
    %v232 = vclz %v231
    %v233 = vsub.s32 %v232, 2
    %vm234 = vcmp.gt.s32.totalorder 0, %v233
    %v235 = vsel %vm234, 0, %v233
    %v236 = vsub.s32 32, %v235
    %v237 = vshll.u32 %v228, %v235
    %v238 = vshrl.u32 %v220, %v236
    %v239 = vor.u32 %v237, %v238
    %v240 = vsub.s32 4294967266, %v235
    %v241 = vadd.s32 %v240, 127
    %v242 = vshll.u32 %v241, 23
    %v243 = vor.u32 4788187, %v242
    %v244 = vand.u32 2147483647, %v243
    %v246 = vcvt.s32.f32 %v239
    %v247 = vmul.f32 %v246, %v244
    %v248 = vxor.u32 %v247, 2147483648
    %v249 = vsel %vm166, %v248, %v247
    %v250 = vsub.s32 4, %v226
    %v251 = vsel %vm166, %v250, %v226
    %v252 = vsel %vm165, %v158, %v249
    %v253 = vsel %vm165, 0, %v251
    %v254 = vcosq.f32.pop %v252
    %v255 = vsinq.f32.pop %v252
    %vm256 = vweird.f32 %v158
    %v257 = vadd.s32 %v253, 3
    %v258 = vand.u32 %v257, 3
    %vm259 = vcmp.lt.s32.totalorder %v258, 2
    %vm260 = vcmp.eq.s32.totalorder %v258, 0
    %v261 = vxor.u32 %v255, 2147483648
    %v262 = vsel %vm260, %v254, %v261
    %vm263 = vcmp.eq.s32.totalorder %v258, 2
    %v264 = vxor.u32 %v254, 2147483648
    %v265 = vsel %vm263, %v264, %v255
    %v266 = vsel %vm259, %v262, %v265
    %v267 = vsel %vm256, nan, %v266
    %v268 = vand.u32 2147483647, %v159
    %vm269 = vcmp.le.f32.partialorder %v268, 0.7853982
    %vm270 = vcmp.lt.s32.totalorder %v159, 0
    %v271 = vand.u32 %v159, 2139095040
    %v272 = vshrl.u32 %v271, 23
    %v273 = vsub.s32 %v272, 127
    %v274 = vand.u32 2147483647, %v159
    %v275 = vand.u32 %v274, 8388607
    %v276 = vor.u32 %v275, 8388608
    %v277 = vsub.s32 0, %v276
    %v278 = vadd.s32 %v273, 1
    %vm279 = vcmp.gt.s32.totalorder %v278, 0
    %v280 = vsel %vm279, %v278, 0
    %v281 = vshrl.u32 %v280, 5
    %v282 = vand.u32 %v280, 31
    %v283 = vsub.s32 32, %v282
    %v284 = vshrl.u32 683565275, %v283
    %v285 = vshll.u32 683565275, %v282
    %v286 = vshrl.u32 2475754826, %v283
    %v287 = vor.u32 %v285, %v286
    %v288 = vshll.u32 2475754826, %v282
    %v289 = vshrl.u32 2131351028, %v283
    %v290 = vor.u32 %v288, %v289
    %v291 = vshll.u32 2131351028, %v282
    %v292 = vshrl.u32 2102212464, %v283
    %v293 = vor.u32 %v291, %v292
    %v294 = vshll.u32 2102212464, %v282
    %v295 = vshrl.u32 920167782, %v283
    %v296 = vor.u32 %v294, %v295
    %v297 = vshll.u32 920167782, %v282
    %v298 = vshrl.u32 1326507024, %v283
    %v299 = vor.u32 %v297, %v298
    %vm300 = vcmp.lt.s32.totalorder %v281, 1
    %vm301 = vcmp.lt.s32.totalorder %v281, 2
    %vm302 = vcmp.lt.s32.totalorder %v281, 3
    %vm303 = vcmp.lt.s32.totalorder %v281, 4
    %v304 = vsel %vm300, %v284, %v287
    %v305 = vsel %vm303, %v293, 2102212464
    %v306 = vsel %vm302, %v290, %v305
    %v307 = vsel %vm301, %v304, %v306
    %v308 = vsel %vm300, %v287, %v290
    %v309 = vsel %vm303, %v296, 920167782
    %v310 = vsel %vm302, %v293, %v309
    %v311 = vsel %vm301, %v308, %v310
    %v312 = vsel %vm300, %v290, %v293
    %v313 = vsel %vm303, %v299, 1326507024
    %v314 = vsel %vm302, %v296, %v313
    %v315 = vsel %vm301, %v312, %v314
    %v316 = vshll.u32 %v276, 8
    %v317 = vmul.u32.u64.compose %v316, %v315
    %v318 = vextract.low.u32 %v317
    %v319 = vextract.high.u32 %v317
    %v320 = vmul.u32.u64.compose %v316, %v311
    %v321 = vextract.low.u32 %v320
    %v322 = vextract.high.u32 %v320
    %v323 = vmul.u32 %v316, %v307
    %v324 = vadd.s32 %v319, %v321
    %vm325 = vc.u32 %v319, %v321
    %v326 = vadd.s32 %v322, 1
    %v327 = vsel %vm325, %v326, %v322
    %v328 = vadd.s32 %v323, %v327
    %v329 = vadd.s32 %v328, 536870912
    %v330 = vshrl.u32 %v329, 30
    %v331 = vshll.u32 %v330, 30
    %v332 = vsub.s32 %v328, %v331
    %vm333 = vcmp.lt.s32.totalorder %v332, 0
    %v334 = vsub.s32 0, %v332
    %v335 = vsel %vm333, %v334, %v332
    %v336 = vclz %v335
    %v337 = vsub.s32 %v336, 2
    %vm338 = vcmp.gt.s32.totalorder 0, %v337
    %v339 = vsel %vm338, 0, %v337
    %v340 = vsub.s32 32, %v339
    %v341 = vshll.u32 %v332, %v339
    %v342 = vshrl.u32 %v324, %v340
    %v343 = vor.u32 %v341, %v342
    %v344 = vsub.s32 4294967266, %v339
    %v345 = vadd.s32 %v344, 127
    %v346 = vshll.u32 %v345, 23
    %v347 = vor.u32 4788187, %v346
    %v348 = vand.u32 2147483647, %v347
    %v350 = vcvt.s32.f32 %v343
    %v351 = vmul.f32 %v350, %v348
    %v352 = vxor.u32 %v351, 2147483648
    %v353 = vsel %vm270, %v352, %v351
    %v354 = vsub.s32 4, %v330
    %v355 = vsel %vm270, %v354, %v330
    %v356 = vsel %vm269, %v159, %v353
    %v357 = vsel %vm269, 0, %v355
    %v358 = vcosq.f32.pop %v356
    %v359 = vsinq.f32.pop %v356
    %vm360 = vweird.f32 %v159
    %v361 = vadd.s32 %v357, 3
    %v362 = vand.u32 %v361, 3
    %vm363 = vcmp.lt.s32.totalorder %v362, 2
    %vm364 = vcmp.eq.s32.totalorder %v362, 0
    %v365 = vxor.u32 %v359, 2147483648
    %v366 = vsel %vm364, %v358, %v365
    %vm367 = vcmp.eq.s32.totalorder %v362, 2
    %v368 = vxor.u32 %v358, 2147483648
    %v369 = vsel %vm367, %v368, %v359
    %v370 = vsel %vm363, %v366, %v369
    %v371 = vsel %vm360, nan, %v370
    %v372 = vand.u32 2147483647, %v160
    %vm373 = vcmp.le.f32.partialorder %v372, 0.7853982
    %vm374 = vcmp.lt.s32.totalorder %v160, 0
    %v375 = vand.u32 %v160, 2139095040
    %v376 = vshrl.u32 %v375, 23
    %v377 = vsub.s32 %v376, 127
    %v378 = vand.u32 2147483647, %v160
    %v379 = vand.u32 %v378, 8388607
    %v380 = vor.u32 %v379, 8388608
    %v381 = vsub.s32 0, %v380
    %v382 = vadd.s32 %v377, 1
    %vm383 = vcmp.gt.s32.totalorder %v382, 0
    %v384 = vsel %vm383, %v382, 0
    %v385 = vshrl.u32 %v384, 5
    %v386 = vand.u32 %v384, 31
    %v387 = vsub.s32 32, %v386
    %v388 = vshrl.u32 683565275, %v387
    %v389 = vshll.u32 683565275, %v386
    %v390 = vshrl.u32 2475754826, %v387
    %v391 = vor.u32 %v389, %v390
    %v392 = vshll.u32 2475754826, %v386
    %v393 = vshrl.u32 2131351028, %v387
    %v394 = vor.u32 %v392, %v393
    %v395 = vshll.u32 2131351028, %v386
    %v396 = vshrl.u32 2102212464, %v387
    %v397 = vor.u32 %v395, %v396
    %v398 = vshll.u32 2102212464, %v386
    %v399 = vshrl.u32 920167782, %v387
    %v400 = vor.u32 %v398, %v399
    %v401 = vshll.u32 920167782, %v386
    %v402 = vshrl.u32 1326507024, %v387
    %v403 = vor.u32 %v401, %v402
    %vm404 = vcmp.lt.s32.totalorder %v385, 1
    %vm405 = vcmp.lt.s32.totalorder %v385, 2
    %vm406 = vcmp.lt.s32.totalorder %v385, 3
    %vm407 = vcmp.lt.s32.totalorder %v385, 4
    %v408 = vsel %vm404, %v388, %v391
    %v409 = vsel %vm407, %v397, 2102212464
    %v410 = vsel %vm406, %v394, %v409
    %v411 = vsel %vm405, %v408, %v410
    %v412 = vsel %vm404, %v391, %v394
    %v413 = vsel %vm407, %v400, 920167782
    %v414 = vsel %vm406, %v397, %v413
    %v415 = vsel %vm405, %v412, %v414
    %v416 = vsel %vm404, %v394, %v397
    %v417 = vsel %vm407, %v403, 1326507024
    %v418 = vsel %vm406, %v400, %v417
    %v419 = vsel %vm405, %v416, %v418
    %v420 = vshll.u32 %v380, 8
    %v421 = vmul.u32.u64.compose %v420, %v419
    %v422 = vextract.low.u32 %v421
    %v423 = vextract.high.u32 %v421
    %v424 = vmul.u32.u64.compose %v420, %v415
    %v425 = vextract.low.u32 %v424
    %v426 = vextract.high.u32 %v424
    %v427 = vmul.u32 %v420, %v411
    %v428 = vadd.s32 %v423, %v425
    %vm429 = vc.u32 %v423, %v425
    %v430 = vadd.s32 %v426, 1
    %v431 = vsel %vm429, %v430, %v426
    %v432 = vadd.s32 %v427, %v431
    %v433 = vadd.s32 %v432, 536870912
    %v434 = vshrl.u32 %v433, 30
    %v435 = vshll.u32 %v434, 30
    %v436 = vsub.s32 %v432, %v435
    %vm437 = vcmp.lt.s32.totalorder %v436, 0
    %v438 = vsub.s32 0, %v436
    %v439 = vsel %vm437, %v438, %v436
    %v440 = vclz %v439
    %v441 = vsub.s32 %v440, 2
    %vm442 = vcmp.gt.s32.totalorder 0, %v441
    %v443 = vsel %vm442, 0, %v441
    %v444 = vsub.s32 32, %v443
    %v445 = vshll.u32 %v436, %v443
    %v446 = vshrl.u32 %v428, %v444
    %v447 = vor.u32 %v445, %v446
    %v448 = vsub.s32 4294967266, %v443
    %v449 = vadd.s32 %v448, 127
    %v450 = vshll.u32 %v449, 23
    %v451 = vor.u32 4788187, %v450
    %v452 = vand.u32 2147483647, %v451
    %v454 = vcvt.s32.f32 %v447
    %v455 = vmul.f32 %v454, %v452
    %v456 = vxor.u32 %v455, 2147483648
    %v457 = vsel %vm374, %v456, %v455
    %v458 = vsub.s32 4, %v434
    %v459 = vsel %vm374, %v458, %v434
    %v460 = vsel %vm373, %v160, %v457
    %v461 = vsel %vm373, 0, %v459
    %v462 = vcosq.f32.pop %v460
    %v463 = vsinq.f32.pop %v460
    %vm464 = vweird.f32 %v160
    %v465 = vadd.s32 %v461, 3
    %v466 = vand.u32 %v465, 3
    %vm467 = vcmp.lt.s32.totalorder %v466, 2
    %vm468 = vcmp.eq.s32.totalorder %v466, 0
    %v469 = vxor.u32 %v463, 2147483648
    %v470 = vsel %vm468, %v462, %v469
    %vm471 = vcmp.eq.s32.totalorder %v466, 2
    %v472 = vxor.u32 %v462, 2147483648
    %v473 = vsel %vm471, %v472, %v463
    %v474 = vsel %vm467, %v470, %v473
    %v475 = vsel %vm464, nan, %v474
    %v476 = vand.u32 2147483647, %v158
    %vm477 = vcmp.le.f32.partialorder %v476, 0.7853982
    %vm478 = vcmp.lt.s32.totalorder %v158, 0
    %v479 = vand.u32 %v158, 2139095040
    %v480 = vshrl.u32 %v479, 23
    %v481 = vsub.s32 %v480, 127
    %v482 = vand.u32 2147483647, %v158
    %v483 = vand.u32 %v482, 8388607
    %v484 = vor.u32 %v483, 8388608
    %v485 = vsub.s32 0, %v484
    %v486 = vadd.s32 %v481, 1
    %vm487 = vcmp.gt.s32.totalorder %v486, 0
    %v488 = vsel %vm487, %v486, 0
    %v489 = vshrl.u32 %v488, 5
    %v490 = vand.u32 %v488, 31
    %v491 = vsub.s32 32, %v490
    %v492 = vshrl.u32 683565275, %v491
    %v493 = vshll.u32 683565275, %v490
    %v494 = vshrl.u32 2475754826, %v491
    %v495 = vor.u32 %v493, %v494
    %v496 = vshll.u32 2475754826, %v490
    %v497 = vshrl.u32 2131351028, %v491
    %v498 = vor.u32 %v496, %v497
    %v499 = vshll.u32 2131351028, %v490
    %v500 = vshrl.u32 2102212464, %v491
    %v501 = vor.u32 %v499, %v500
    %v502 = vshll.u32 2102212464, %v490
    %v503 = vshrl.u32 920167782, %v491
    %v504 = vor.u32 %v502, %v503
    %v505 = vshll.u32 920167782, %v490
    %v506 = vshrl.u32 1326507024, %v491
    %v507 = vor.u32 %v505, %v506
    %vm508 = vcmp.lt.s32.totalorder %v489, 1
    %vm509 = vcmp.lt.s32.totalorder %v489, 2
    %vm510 = vcmp.lt.s32.totalorder %v489, 3
    %vm511 = vcmp.lt.s32.totalorder %v489, 4
    %v512 = vsel %vm508, %v492, %v495
    %v513 = vsel %vm511, %v501, 2102212464
    %v514 = vsel %vm510, %v498, %v513
    %v515 = vsel %vm509, %v512, %v514
    %v516 = vsel %vm508, %v495, %v498
    %v517 = vsel %vm511, %v504, 920167782
    %v518 = vsel %vm510, %v501, %v517
    %v519 = vsel %vm509, %v516, %v518
    %v520 = vsel %vm508, %v498, %v501
    %v521 = vsel %vm511, %v507, 1326507024
    %v522 = vsel %vm510, %v504, %v521
    %v523 = vsel %vm509, %v520, %v522
    %v524 = vshll.u32 %v484, 8
    %v525 = vmul.u32.u64.compose %v524, %v523
    %v526 = vextract.low.u32 %v525
    %v527 = vextract.high.u32 %v525
    %v528 = vmul.u32.u64.compose %v524, %v519
    %v529 = vextract.low.u32 %v528
    %v530 = vextract.high.u32 %v528
    %v531 = vmul.u32 %v524, %v515
    %v532 = vadd.s32 %v527, %v529
    %vm533 = vc.u32 %v527, %v529
    %v534 = vadd.s32 %v530, 1
    %v535 = vsel %vm533, %v534, %v530
    %v536 = vadd.s32 %v531, %v535
    %v537 = vadd.s32 %v536, 536870912
    %v538 = vshrl.u32 %v537, 30
    %v539 = vshll.u32 %v538, 30
    %v540 = vsub.s32 %v536, %v539
    %vm541 = vcmp.lt.s32.totalorder %v540, 0
    %v542 = vsub.s32 0, %v540
    %v543 = vsel %vm541, %v542, %v540
    %v544 = vclz %v543
    %v545 = vsub.s32 %v544, 2
    %vm546 = vcmp.gt.s32.totalorder 0, %v545
    %v547 = vsel %vm546, 0, %v545
    %v548 = vsub.s32 32, %v547
    %v549 = vshll.u32 %v540, %v547
    %v550 = vshrl.u32 %v532, %v548
    %v551 = vor.u32 %v549, %v550
    %v552 = vsub.s32 4294967266, %v547
    %v553 = vadd.s32 %v552, 127
    %v554 = vshll.u32 %v553, 23
    %v555 = vor.u32 4788187, %v554
    %v556 = vand.u32 2147483647, %v555
    %v558 = vcvt.s32.f32 %v551
    %v559 = vmul.f32 %v558, %v556
    %v560 = vxor.u32 %v559, 2147483648
    %v561 = vsel %vm478, %v560, %v559
    %v562 = vsub.s32 4, %v538
    %v563 = vsel %vm478, %v562, %v538
    %v564 = vsel %vm477, %v158, %v561
    %v565 = vsel %vm477, 0, %v563
    %v566 = vcosq.f32.pop %v564
    %v567 = vsinq.f32.pop %v564
    %vm568 = vweird.f32 %v158
    %v569 = vand.u32 %v565, 3
    %vm570 = vcmp.lt.s32.totalorder %v569, 2
    %vm571 = vcmp.eq.s32.totalorder %v569, 0
    %v572 = vxor.u32 %v567, 2147483648
    %v573 = vsel %vm571, %v566, %v572
    %vm574 = vcmp.eq.s32.totalorder %v569, 2
    %v575 = vxor.u32 %v566, 2147483648
    %v576 = vsel %vm574, %v575, %v567
    %v577 = vsel %vm570, %v573, %v576
    %v578 = vsel %vm568, nan, %v577
    %v579 = vand.u32 2147483647, %v159
    %vm580 = vcmp.le.f32.partialorder %v579, 0.7853982
    %vm581 = vcmp.lt.s32.totalorder %v159, 0
    %v582 = vand.u32 %v159, 2139095040
    %v583 = vshrl.u32 %v582, 23
    %v584 = vsub.s32 %v583, 127
    %v585 = vand.u32 2147483647, %v159
    %v586 = vand.u32 %v585, 8388607
    %v587 = vor.u32 %v586, 8388608
    %v588 = vsub.s32 0, %v587
    %v589 = vadd.s32 %v584, 1
    %vm590 = vcmp.gt.s32.totalorder %v589, 0
    %v591 = vsel %vm590, %v589, 0
    %v592 = vshrl.u32 %v591, 5
    %v593 = vand.u32 %v591, 31
    %v594 = vsub.s32 32, %v593
    %v595 = vshrl.u32 683565275, %v594
    %v596 = vshll.u32 683565275, %v593
    %v597 = vshrl.u32 2475754826, %v594
    %v598 = vor.u32 %v596, %v597
    %v599 = vshll.u32 2475754826, %v593
    %v600 = vshrl.u32 2131351028, %v594
    %v601 = vor.u32 %v599, %v600
    %v602 = vshll.u32 2131351028, %v593
    %v603 = vshrl.u32 2102212464, %v594
    %v604 = vor.u32 %v602, %v603
    %v605 = vshll.u32 2102212464, %v593
    %v606 = vshrl.u32 920167782, %v594
    %v607 = vor.u32 %v605, %v606
    %v608 = vshll.u32 920167782, %v593
    %v609 = vshrl.u32 1326507024, %v594
    %v610 = vor.u32 %v608, %v609
    %vm611 = vcmp.lt.s32.totalorder %v592, 1
    %vm612 = vcmp.lt.s32.totalorder %v592, 2
    %vm613 = vcmp.lt.s32.totalorder %v592, 3
    %vm614 = vcmp.lt.s32.totalorder %v592, 4
    %v615 = vsel %vm611, %v595, %v598
    %v616 = vsel %vm614, %v604, 2102212464
    %v617 = vsel %vm613, %v601, %v616
    %v618 = vsel %vm612, %v615, %v617
    %v619 = vsel %vm611, %v598, %v601
    %v620 = vsel %vm614, %v607, 920167782
    %v621 = vsel %vm613, %v604, %v620
    %v622 = vsel %vm612, %v619, %v621
    %v623 = vsel %vm611, %v601, %v604
    %v624 = vsel %vm614, %v610, 1326507024
    %v625 = vsel %vm613, %v607, %v624
    %v626 = vsel %vm612, %v623, %v625
    %v627 = vshll.u32 %v587, 8
    %v628 = vmul.u32.u64.compose %v627, %v626
    %v629 = vextract.low.u32 %v628
    %v630 = vextract.high.u32 %v628
    %v631 = vmul.u32.u64.compose %v627, %v622
    %v632 = vextract.low.u32 %v631
    %v633 = vextract.high.u32 %v631
    %v634 = vmul.u32 %v627, %v618
    %v635 = vadd.s32 %v630, %v632
    %vm636 = vc.u32 %v630, %v632
    %v637 = vadd.s32 %v633, 1
    %v638 = vsel %vm636, %v637, %v633
    %v639 = vadd.s32 %v634, %v638
    %v640 = vadd.s32 %v639, 536870912
    %v641 = vshrl.u32 %v640, 30
    %v642 = vshll.u32 %v641, 30
    %v643 = vsub.s32 %v639, %v642
    %vm644 = vcmp.lt.s32.totalorder %v643, 0
    %v645 = vsub.s32 0, %v643
    %v646 = vsel %vm644, %v645, %v643
    %v647 = vclz %v646
    %v648 = vsub.s32 %v647, 2
    %vm649 = vcmp.gt.s32.totalorder 0, %v648
    %v650 = vsel %vm649, 0, %v648
    %v651 = vsub.s32 32, %v650
    %v652 = vshll.u32 %v643, %v650
    %v653 = vshrl.u32 %v635, %v651
    %v654 = vor.u32 %v652, %v653
    %v655 = vsub.s32 4294967266, %v650
    %v656 = vadd.s32 %v655, 127
    %v657 = vshll.u32 %v656, 23
    %v658 = vor.u32 4788187, %v657
    %v659 = vand.u32 2147483647, %v658
    %v661 = vcvt.s32.f32 %v654
    %v662 = vmul.f32 %v661, %v659
    %v663 = vxor.u32 %v662, 2147483648
    %v664 = vsel %vm581, %v663, %v662
    %v665 = vsub.s32 4, %v641
    %v666 = vsel %vm581, %v665, %v641
    %v667 = vsel %vm580, %v159, %v664
    %v668 = vsel %vm580, 0, %v666
    %v669 = vcosq.f32.pop %v667
    %v670 = vsinq.f32.pop %v667
    %vm671 = vweird.f32 %v159
    %v672 = vand.u32 %v668, 3
    %vm673 = vcmp.lt.s32.totalorder %v672, 2
    %vm674 = vcmp.eq.s32.totalorder %v672, 0
    %v675 = vxor.u32 %v670, 2147483648
    %v676 = vsel %vm674, %v669, %v675
    %vm677 = vcmp.eq.s32.totalorder %v672, 2
    %v678 = vxor.u32 %v669, 2147483648
    %v679 = vsel %vm677, %v678, %v670
    %v680 = vsel %vm673, %v676, %v679
    %v681 = vsel %vm671, nan, %v680
    %v682 = vand.u32 2147483647, %v160
    %vm683 = vcmp.le.f32.partialorder %v682, 0.7853982
    %vm684 = vcmp.lt.s32.totalorder %v160, 0
    %v685 = vand.u32 %v160, 2139095040
    %v686 = vshrl.u32 %v685, 23
    %v687 = vsub.s32 %v686, 127
    %v688 = vand.u32 2147483647, %v160
    %v689 = vand.u32 %v688, 8388607
    %v690 = vor.u32 %v689, 8388608
    %v691 = vsub.s32 0, %v690
    %v692 = vadd.s32 %v687, 1
    %vm693 = vcmp.gt.s32.totalorder %v692, 0
    %v694 = vsel %vm693, %v692, 0
    %v695 = vshrl.u32 %v694, 5
    %v696 = vand.u32 %v694, 31
    %v697 = vsub.s32 32, %v696
    %v698 = vshrl.u32 683565275, %v697
    %v699 = vshll.u32 683565275, %v696
    %v700 = vshrl.u32 2475754826, %v697
    %v701 = vor.u32 %v699, %v700
    %v702 = vshll.u32 2475754826, %v696
    %v703 = vshrl.u32 2131351028, %v697
    %v704 = vor.u32 %v702, %v703
    %v705 = vshll.u32 2131351028, %v696
    %v706 = vshrl.u32 2102212464, %v697
    %v707 = vor.u32 %v705, %v706
    %v708 = vshll.u32 2102212464, %v696
    %v709 = vshrl.u32 920167782, %v697
    %v710 = vor.u32 %v708, %v709
    %v711 = vshll.u32 920167782, %v696
    %v712 = vshrl.u32 1326507024, %v697
    %v713 = vor.u32 %v711, %v712
    %vm714 = vcmp.lt.s32.totalorder %v695, 1
    %vm715 = vcmp.lt.s32.totalorder %v695, 2
    %vm716 = vcmp.lt.s32.totalorder %v695, 3
    %vm717 = vcmp.lt.s32.totalorder %v695, 4
    %v718 = vsel %vm714, %v698, %v701
    %v719 = vsel %vm717, %v707, 2102212464
    %v720 = vsel %vm716, %v704, %v719
    %v721 = vsel %vm715, %v718, %v720
    %v722 = vsel %vm714, %v701, %v704
    %v723 = vsel %vm717, %v710, 920167782
    %v724 = vsel %vm716, %v707, %v723
    %v725 = vsel %vm715, %v722, %v724
    %v726 = vsel %vm714, %v704, %v707
    %v727 = vsel %vm717, %v713, 1326507024
    %v728 = vsel %vm716, %v710, %v727
    %v729 = vsel %vm715, %v726, %v728
    %v730 = vshll.u32 %v690, 8
    %v731 = vmul.u32.u64.compose %v730, %v729
    %v732 = vextract.low.u32 %v731
    %v733 = vextract.high.u32 %v731
    %v734 = vmul.u32.u64.compose %v730, %v725
    %v735 = vextract.low.u32 %v734
    %v736 = vextract.high.u32 %v734
    %v737 = vmul.u32 %v730, %v721
    %v738 = vadd.s32 %v733, %v735
    %vm739 = vc.u32 %v733, %v735
    %v740 = vadd.s32 %v736, 1
    %v741 = vsel %vm739, %v740, %v736
    %v742 = vadd.s32 %v737, %v741
    %v743 = vadd.s32 %v742, 536870912
    %v744 = vshrl.u32 %v743, 30
    %v745 = vshll.u32 %v744, 30
    %v746 = vsub.s32 %v742, %v745
    %vm747 = vcmp.lt.s32.totalorder %v746, 0
    %v748 = vsub.s32 0, %v746
    %v749 = vsel %vm747, %v748, %v746
    %v750 = vclz %v749
    %v751 = vsub.s32 %v750, 2
    %vm752 = vcmp.gt.s32.totalorder 0, %v751
    %v753 = vsel %vm752, 0, %v751
    %v754 = vsub.s32 32, %v753
    %v755 = vshll.u32 %v746, %v753
    %v756 = vshrl.u32 %v738, %v754
    %v757 = vor.u32 %v755, %v756
    %v758 = vsub.s32 4294967266, %v753
    %v759 = vadd.s32 %v758, 127
    %v760 = vshll.u32 %v759, 23
    %v761 = vor.u32 4788187, %v760
    %v762 = vand.u32 2147483647, %v761
    %v764 = vcvt.s32.f32 %v757
    %v765 = vmul.f32 %v764, %v762
    %v766 = vxor.u32 %v765, 2147483648
    %v767 = vsel %vm684, %v766, %v765
    %v768 = vsub.s32 4, %v744
    %v769 = vsel %vm684, %v768, %v744
    %v770 = vsel %vm683, %v160, %v767
    %v771 = vsel %vm683, 0, %v769
    %v772 = vcosq.f32.pop %v770
    %v773 = vsinq.f32.pop %v770
    %vm774 = vweird.f32 %v160
    %v775 = vand.u32 %v771, 3
    %vm776 = vcmp.lt.s32.totalorder %v775, 2
    %vm777 = vcmp.eq.s32.totalorder %v775, 0
    %v778 = vxor.u32 %v773, 2147483648
    %v779 = vsel %vm777, %v772, %v778
    %vm780 = vcmp.eq.s32.totalorder %v775, 2
    %v781 = vxor.u32 %v772, 2147483648
    %v782 = vsel %vm780, %v781, %v773
    %v783 = vsel %vm776, %v779, %v782
    %v784 = vsel %vm774, nan, %v783
    %v785 = vsel %vm163, 1, 0
    %v786 = vlaneseq
    %v787 = vshrl.u32 %v786, 7
    %v788 = vsub.s32 0, %v787
    %v789 = vrot.slane %v785, %v788
    %vm790 = vcmp.eq.s32.totalorder %v789, 1
    %v791 = vsel %vm790, %v267, %v578
    %v792 = vsel %vm790, %v371, %v681
    %v793 = vsel %vm790, %v475, %v784
    %v794 = vsel %vm162, 1, 0
    %v795 = vlaneseq
    %v796 = vshrl.u32 %v795, 7
    %v797 = vsub.s32 0, %v796
    %v798 = vrot.slane %v794, %v797
    %vm799 = vcmp.eq.s32.totalorder %v798, 1
    %v800 = vsel %vm799, %v158, %v791
    %v801 = vsel %vm799, %v159, %v792
    %v802 = vsel %vm799, %v160, %v793
    %vm803 = vcmask 269312
    %804 = vst.msk [vmem:[#allocation2] sm:$0xff] %vm803, %v800
    %805 = vst.msk [vmem:[#allocation2 + $0x8] sm:$0xff] %vm803, %v801
    %806 = vst.msk [vmem:[#allocation2 + $0x10] sm:$0xff] %vm803, %v802
    // Predicated region
    $region14: #{tpu_custom_call.1} parent=1 // pred_check
      _
    $region15: #{tpu_custom_call.1} parent=1 // pred_check_branch
      %808 = sbr.rel (0) target = $region17
    $region16: #{tpu_custom_call.1} parent=1 // pred_region
      %s810 = ssub.s32 384, 384
      %811 = vsyncadd [#allocation3], %s810
      %s812 = sshll.u32 [#allocation2], 4
      %s813 = int_to_ptr.vmem [resolvable:$true] %s812
      %818 = dma.vmem_to_hbm [thread:$0]  %s813, 384, %s3, [#allocation3], 128, 128, 8
    $region17: #{tpu_custom_call.1} parent=1 // pred_fallthru
      _
    // Predicated region
    $region18: #{tpu_custom_call.1} parent=1 // pred_check
      _
    $region19: #{tpu_custom_call.1} parent=1 // pred_check_branch
      %820 = sbr.rel (0) target = $region21
    $region20: #{tpu_custom_call.1} parent=1 // pred_region
      %821 = dma.done [#allocation3], 384
    $region21: #{tpu_custom_call.1} parent=1 // pred_fallthru
      _
    %822 = vsyncpa [#allocation3], 1

</llo_original>
